<compile_context>
chip_gen: v5e
topology: v5e:2x2
jax: 0.10.0
libtpu: 0.0.40
codegen_flags: <defaults>
</compile_context>

<pallas_src>
import functools

import jax
import jax.numpy as jnp
from jax import lax
from jax.experimental import pallas as pl
from jax.experimental.pallas import tpu as pltpu

LANE = 128
SUBLANE = 8
# 4096 rows x 128 lanes x 4 B = 2 MiB per f32 block per input.
# 2 inputs x 2 pipeline buffers x 2 MiB = 8 MiB: fits the scoped-VMEM default
# on every generation (v5e 16 MiB, v6e/v7x 32 MiB).
_TARGET_TILE_ROWS = 4096


def _focal_kernel(x_ref, t_ref, out_ref, *, gamma, tile_rows, rows_valid,
                  mask_tail, binary_targets):
    k = pl.program_id(1)

    x = x_ref[0].astype(jnp.float32)            # (tile_rows, 128)
    t = t_ref[0].astype(jnp.float32)

    # binary_cross_entropy; PyTorch clamps the log terms at -100, which also
    # makes zero-padded tail elements contribute exactly 0 to the sum.
    if binary_targets:
        # Binary-target fast path: pt on the VPU, a single EUP log/element.
        pt = t * x + (1.0 - t) * (1.0 - x)
        s = jnp.maximum(jnp.log(pt), -100.0)    # s = -bce
    else:
        # General (soft-target) path: exp(s) is required, 3 EUP ops/element.
        log_x = jnp.maximum(jnp.log(x), -100.0)
        log_1mx = jnp.maximum(jnp.log(1.0 - x), -100.0)
        s = t * (log_x - log_1mx) + log_1mx     # s = -bce ;  pt = exp(s)
        pt = jnp.exp(s)

    one_minus_pt = 1.0 - pt
    g = float(gamma)
    if g == 2.0:
        w = one_minus_pt * one_minus_pt
    elif g == 1.0:
        w = one_minus_pt
    elif g == 0.0:
        w = jnp.ones_like(one_minus_pt)
    else:
        w = jnp.power(one_minus_pt, jnp.float32(g))

    # Accumulate w*s; sign (bce = -s), alpha and 1/N folded into the wrapper.
    f = w * s

    if mask_tail:
        # Only ragged configs trace this; the last row-tile of a split may
        # read rows past rows_valid (garbage).  NaN-safe select zeroes them.
        row = lax.broadcasted_iota(jnp.int32, (tile_rows, 1), 0)
        valid = (k * tile_rows + row) < rows_valid
        f = jnp.where(valid, f, 0.0)

    # Fold rows into a lane-dense (8, 128) slab with plain VPU adds; the
    # cross-lane/sublane reduce to a scalar happens once, in the wrapper.
    partial = jnp.sum(f.reshape(tile_rows // SUBLANE, SUBLANE, LANE), axis=0)

    @pl.when(k == 0)
    def _():
        out_ref[0] = partial

    @pl.when(k > 0)
    def _():
        out_ref[0] = out_ref[0] + partial


def focal_loss(inputs, targets, *, alpha=1.0, gamma=2.0, logits=False,
               reduce=True, add_weight=False, assume_binary_targets=False):
    """Pallas TPU implementation of FocalLoss.forward (default configuration).

    inputs, targets: same shape; any float dtype (cast to f32 in-kernel).
    assume_binary_targets: opt-in fast path (1 EUP op/element); only valid when
      every target is exactly 0.0 or 1.0.
    Returns scalar float32 (mean focal loss).
    """
    # TODO(synk): logits=True, add_weight=True and reduce=False branches of
    # FocalLoss.forward are not implemented here (module defaults only).
    assert not logits and not add_weight and reduce, "default config only"
    assert inputs.shape == targets.shape
    n_total = 1
    for d in inputs.shape:
        n_total *= d

    x = inputs.reshape(-1)
    t = targets.reshape(-1)

    # Lay the flat element stream out as (rows, 128) lanes.  Pad (rarely) so
    # rows is a multiple of the sublane count; zero padding provably adds 0.
    # TODO(synk): for large badly-aligned inputs this jnp.pad copies both
    # arrays in HBM; an in-kernel lane mask would avoid that traffic.
    unit = SUBLANE * LANE
    n_pad = ((n_total + unit - 1) // unit) * unit
    if n_pad != n_total:
        x = jnp.pad(x, (0, n_pad - n_total))
        t = jnp.pad(t, (0, n_pad - n_total))
    rows = n_pad // LANE                       # multiple of 8

    # Leading 2-way "parallel" split so both v7x TensorCores stream (no-op on
    # single-core v5e/v6e).
    n_split = 2 if rows % (2 * SUBLANE) == 0 else 1
    rows_per_split = rows // n_split

    tile_rows = min(_TARGET_TILE_ROWS, rows_per_split)   # multiple of 8
    num_k = pl.cdiv(rows_per_split, tile_rows)
    mask_tail = (rows_per_split % tile_rows) != 0

    x3 = x.reshape(n_split, rows_per_split, LANE)        # free contiguous view
    t3 = t.reshape(n_split, rows_per_split, LANE)

    kernel = functools.partial(
        _focal_kernel, gamma=float(gamma), tile_rows=tile_rows,
        rows_valid=rows_per_split, mask_tail=mask_tail,
        binary_targets=assume_binary_targets)

    # Default 2-deep pipelining: block size, not buffer depth, is the lever.
    in_spec = pl.BlockSpec((1, tile_rows, LANE), lambda c, k: (c, k, 0))

    bytes_in = x3.size * x3.dtype.itemsize + t3.size * t3.dtype.itemsize
    cost = pl.CostEstimate(
        flops=10 * n_pad,
        transcendentals=(1 if assume_binary_targets else 3) * n_pad,
        bytes_accessed=bytes_in + n_split * SUBLANE * LANE * 4)

    partials = pl.pallas_call(
        kernel,
        out_shape=jax.ShapeDtypeStruct((n_split, SUBLANE, LANE), jnp.float32),
        grid_spec=pltpu.PrefetchScalarGridSpec(
            num_scalar_prefetch=0,
            grid=(n_split, num_k),
            in_specs=[in_spec, in_spec],
            out_specs=pl.BlockSpec((1, SUBLANE, LANE), lambda c, k: (c, 0, 0)),
        ),
        compiler_params=pltpu.CompilerParams(
            dimension_semantics=("parallel", "arbitrary")),
        cost_estimate=cost,
    )(x3, t3)

    # Final cross-lane reduce + sign + alpha + 1/N in one cheap wrapper op.
    return (-jnp.float32(alpha) / jnp.float32(n_total)) * jnp.sum(partials)


def focal_loss_ref(inputs, targets, *, alpha=1.0, gamma=2.0):
    """Pure-JAX reference mirroring the PyTorch module (default flags)."""
    x = inputs.astype(jnp.float32).reshape(-1)
    t = targets.astype(jnp.float32).reshape(-1)
    log_x = jnp.maximum(jnp.log(x), -100.0)
    log_1mx = jnp.maximum(jnp.log(1.0 - x), -100.0)
    bce = -(t * log_x + (1.0 - t) * log_1mx)
    pt = jnp.exp(-bce)
    return jnp.mean(alpha * (1.0 - pt) ** gamma * bce)


if __name__ == "__main__":
    # Module __init__ defaults: alpha=1, gamma=2, logits=False, reduce=True.
    alpha, gamma = 1.0, 2.0

    key = jax.random.PRNGKey(0)
    k1, k2 = jax.random.split(key)
    B, C, H, W = 2, 4, 16, 16
    # "inputs": probabilities in (0,1); "targets": binary mask, same shape.
    x = jax.nn.sigmoid(jax.random.normal(k1, (B, C, H, W), dtype=jnp.float32))
    t = (jax.random.uniform(k2, (B, C, H, W)) > 0.5).astype(jnp.float32)

    ref = focal_loss_ref(x, t, alpha=alpha, gamma=gamma)

    # General (soft-target-safe) path.
    loss = focal_loss(x, t, alpha=alpha, gamma=gamma)
    loss = jax.block_until_ready(loss)
    assert jnp.allclose(loss, ref, atol=1e-5, rtol=1e-5), (loss, ref)

    # Binary-target fast path (1 transcendental/element instead of 3).
    loss_b = focal_loss(x, t, alpha=alpha, gamma=gamma,
                        assume_binary_targets=True)
    loss_b = jax.block_until_ready(loss_b)
    assert jnp.allclose(loss_b, ref, atol=1e-5, rtol=1e-5), (loss_b, ref)

    print("KERNEL_OK")
</pallas_src>

<mosaic_0001>
module attributes {stable_mosaic.version = 11 : i64} {
  func.func @_focal_kernel(%arg0: i32, %arg1: i32, %arg2: memref<1x8x128xf32, #tpu.memory_space<vmem>>, %arg3: memref<1x8x128xf32, #tpu.memory_space<vmem>>, %arg4: memref<1x8x128xf32, #tpu.memory_space<vmem>>) attributes {dimension_semantics = [#tpu.dimension_semantics<parallel>, #tpu.dimension_semantics<arbitrary>], iteration_bounds = array<i64: 2, 1>, scalar_prefetch = 0 : i64, scratch_operands = 0 : i64, tpu.core_type = #tpu.core_type<tc>, window_params = [{transform_indices = @transform_0, window_bounds = array<i64: 1, 8, 128>}, {transform_indices = @transform_1, window_bounds = array<i64: 1, 8, 128>}, {transform_indices = @transform_2, window_bounds = array<i64: 1, 8, 128>}]} {
    %c0 = arith.constant 0 : index
    %c0_0 = arith.constant 0 : index
    %c0_1 = arith.constant 0 : index
    %0 = vector.load %arg2[%c0, %c0_0, %c0_1] : memref<1x8x128xf32, #tpu.memory_space<vmem>>, vector<1x8x128xf32>
    %1 = vector.shape_cast %0 : vector<1x8x128xf32> to vector<8x128xf32>
    %c0_2 = arith.constant 0 : index
    %c0_3 = arith.constant 0 : index
    %c0_4 = arith.constant 0 : index
    %2 = vector.load %arg3[%c0_2, %c0_3, %c0_4] : memref<1x8x128xf32, #tpu.memory_space<vmem>>, vector<1x8x128xf32>
    %3 = vector.shape_cast %2 : vector<1x8x128xf32> to vector<8x128xf32>
    %4 = math.log %1 : vector<8x128xf32>
    %cst = arith.constant -1.000000e+02 : f32
    %5 = vector.broadcast %cst : f32 to vector<8x128xf32>
    %6 = arith.maximumf %4, %5 : vector<8x128xf32>
    %cst_5 = arith.constant 1.000000e+00 : f32
    %7 = vector.broadcast %cst_5 : f32 to vector<8x128xf32>
    %8 = arith.subf %7, %1 : vector<8x128xf32>
    %9 = math.log %8 : vector<8x128xf32>
    %cst_6 = arith.constant -1.000000e+02 : f32
    %10 = vector.broadcast %cst_6 : f32 to vector<8x128xf32>
    %11 = arith.maximumf %9, %10 : vector<8x128xf32>
    %12 = arith.subf %6, %11 : vector<8x128xf32>
    %13 = arith.mulf %3, %12 : vector<8x128xf32>
    %14 = arith.addf %13, %11 : vector<8x128xf32>
    %15 = math.exp %14 : vector<8x128xf32>
    %cst_7 = arith.constant 1.000000e+00 : f32
    %16 = vector.broadcast %cst_7 : f32 to vector<8x128xf32>
    %17 = arith.subf %16, %15 : vector<8x128xf32>
    %18 = arith.mulf %17, %17 : vector<8x128xf32>
    %19 = arith.mulf %18, %14 : vector<8x128xf32>
    %20 = vector.shape_cast %19 : vector<8x128xf32> to vector<1x8x128xf32>
    %cst_8 = arith.constant dense<0.000000e+00> : vector<8x128xf32>
    %21 = vector.multi_reduction <add>, %20, %cst_8 [0] : vector<1x8x128xf32> to vector<8x128xf32>
    %c0_i32 = arith.constant 0 : i32
    %22 = arith.cmpi eq, %arg1, %c0_i32 : i32
    %23 = arith.extui %22 : i1 to i32
    %c0_i32_9 = arith.constant 0 : i32
    %24 = arith.cmpi ne, %23, %c0_i32_9 : i32
    scf.if %24 {
      %c0_12 = arith.constant 0 : index
      %c0_13 = arith.constant 0 : index
      %c0_14 = arith.constant 0 : index
      %28 = vector.load %arg4[%c0_12, %c0_13, %c0_14] : memref<1x8x128xf32, #tpu.memory_space<vmem>>, vector<1x8x128xf32>
      %29 = vector.shape_cast %28 : vector<1x8x128xf32> to vector<8x128xf32>
      %30 = vector.shape_cast %21 : vector<8x128xf32> to vector<1x8x128xf32>
      tpu.vector_store %arg4[%c0_12, %c0_13, %c0_14], %30 {strides = array<i32>} : memref<1x8x128xf32, #tpu.memory_space<vmem>>, vector<1x8x128xf32>,
    } else {
    }
    %c0_i32_10 = arith.constant 0 : i32
    %25 = arith.cmpi sgt, %arg1, %c0_i32_10 : i32
    %26 = arith.extui %25 : i1 to i32
    %c0_i32_11 = arith.constant 0 : i32
    %27 = arith.cmpi ne, %26, %c0_i32_11 : i32
    scf.if %27 {
      %c0_12 = arith.constant 0 : index
      %c0_13 = arith.constant 0 : index
      %c0_14 = arith.constant 0 : index
      %28 = vector.load %arg4[%c0_12, %c0_13, %c0_14] : memref<1x8x128xf32, #tpu.memory_space<vmem>>, vector<1x8x128xf32>
      %29 = vector.shape_cast %28 : vector<1x8x128xf32> to vector<8x128xf32>
      %30 = arith.addf %29, %21 : vector<8x128xf32>
      %c0_15 = arith.constant 0 : index
      %c0_16 = arith.constant 0 : index
      %c0_17 = arith.constant 0 : index
      %31 = vector.load %arg4[%c0_15, %c0_16, %c0_17] : memref<1x8x128xf32, #tpu.memory_space<vmem>>, vector<1x8x128xf32>
      %32 = vector.shape_cast %31 : vector<1x8x128xf32> to vector<8x128xf32>
      %33 = vector.shape_cast %30 : vector<8x128xf32> to vector<1x8x128xf32>
      tpu.vector_store %arg4[%c0_15, %c0_16, %c0_17], %33 {strides = array<i32>} : memref<1x8x128xf32, #tpu.memory_space<vmem>>, vector<1x8x128xf32>,
    } else {
    }
    return
  }
  func.func @transform_0(%arg0: i32, %arg1: i32) -> (i32, i32, i32) {
    %c0_i32 = arith.constant 0 : i32
    %c0_i32_0 = arith.constant 0 : i32
    return %arg0, %arg1, %c0_i32 : i32, i32, i32
  }
  func.func @transform_1(%arg0: i32, %arg1: i32) -> (i32, i32, i32) {
    %c0_i32 = arith.constant 0 : i32
    %c0_i32_0 = arith.constant 0 : i32
    return %arg0, %arg1, %c0_i32 : i32, i32, i32
  }
  func.func @transform_2(%arg0: i32, %arg1: i32) -> (i32, i32, i32) {
    %c0_i32 = arith.constant 0 : i32
    %c0_i32_0 = arith.constant 0 : i32
    %c0_i32_1 = arith.constant 0 : i32
    return %arg0, %c0_i32, %c0_i32_0 : i32, i32, i32
  }
}

</mosaic_0001>

<llo_original>
// kernel: tpu_custom_call.1
$region0: #{tpu_custom_call.1}
  #allocation0 [shape = 'u32[]', space=smem, size = 0x4, offset = 0x4, fixed_abs, tag = 'smem constant byte address 0x4 - core index']
  #allocation1 [shape = 'u32[72,128]{1,0:T(1,128)}', space=vmem, size = 0x9000, scoped, tag = 'internal scratch']
  %s0 = inlined_call_operand.hbm [shape: f32[2,8,128], index: 0, kind: input, shape index: {}]
  %s1 = inlined_call_operand.hbm [shape: f32[2,8,128], index: 1, kind: input, shape index: {}]
  %s2 = inlined_call_operand.hbm [shape: f32[2,8,128], index: 2, kind: output, shape index: {}]
  %s3 = sld [smem:[#allocation0]]
  $region57: #{tpu_custom_call.1} parent=0
    _
  %s5 = ssub.s32 1, %s3
  %s6 = scalar_select 0, %s5, %s3
  $region1: #{tpu_custom_call.1} parent=0
    #allocation2 [shape = 'u8[8192]{0}', space=vmem, size = 0x2000, scoped, tag = 'input window, operand 0']
    #allocation3 [shape = 's32[2]{0}', space=sflag, size = 0x8, scoped, tag = 'scoped memory for tpu_custom_call.1']
    #allocation4 [shape = 's32[2]{0}', space=sflag, size = 0x8, scoped, tag = 'scoped memory for tpu_custom_call.1']
    #allocation5 [shape = 'u8[8192]{0}', space=vmem, size = 0x2000, scoped, tag = 'input window, operand 1']
    #allocation6 [shape = 's32[2]{0}', space=sflag, size = 0x8, scoped, tag = 'scoped memory for tpu_custom_call.1']
    #allocation7 [shape = 'u8[8192]{0}', space=vmem, size = 0x2000, scoped, tag = 'output window, operand 0']
    %7 = vsyncpa [#allocation3], 0
    %s8 = scalar_lea.sflag [#allocation3], 1
    %9 = vsyncpa %s8, 0
    %10 = vsyncpa [#allocation6], 0
    %s11 = scalar_lea.sflag [#allocation6], 1
    %12 = vsyncpa %s11, 0
    %13 = vsyncpa [#allocation4], 0
    %s14 = scalar_lea.sflag [#allocation4], 1
    %15 = vsyncpa %s14, 0
    loop: start=0, step=1, limit=4
    $region2: #{tpu_custom_call.1} parent=1 // loop_pre_header
      _
    $region3: #{tpu_custom_call.1} parent=1 // loop_header
      %s17 = sphi 0, %s21
      %p18 = scmp.ge.s32.totalorder %s17, 4
      %s24 = sphi 0, %s36
      %s25 = sphi 0, %s32
      %s26 = sphi 0, %s24
      %s27 = sphi 0, %s25
      %s28 = sphi 0, %s26
      %s29 = sphi 0, %s27
      %s41 = sphi 0, %s43
      %s44 = sphi 0, %s41
      %s45 = sphi 0, %s44
      %s61 = sphi 0, %s45
      %s69 = sphi 0, %s71
      %s72 = sphi 0, %s69
      %s73 = sphi 0, %s72
      %s89 = sphi 0, %s73
      %s95 = sphi 0, %s97
      %s98 = sphi 0, %s95
      %s99 = sphi 0, %s98
      %s115 = sphi 0, %s99
    $region4: #{tpu_custom_call.1} parent=1 // loop_header_branch
      %20 = sbr.rel (%p18) target = $region8
    $region5: #{tpu_custom_call.1} parent=1 // loop_body
      %s22 = ssub.s32 %s17, 1
      %s23 = ssub.s32 %s17, 2
      %s30 = sadd.s32 1, %s25
      %p31 = scmp.ge.s32.totalorder %s30, 1
      %s32 = scalar_select %p31, 0, %s30
      %s33 = sadd.s32 1, %s24
      %s34 = scalar_select %p31, %s33, %s24
      %p35 = scmp.ge.s32.totalorder %s34, 2
      %s36 = scalar_select %p35, 0, %s34
      %s37 = ssub.s32 %s24, %s36
      %s38 = ssub.s32 %s25, %s32
      %s39 = sor.u32 %s37, %s38
      %p40 = scmp.eq.s32.totalorder %s39, 0
      %s42 = sadd.s32 %s41, 1
      %s43 = scalar_select %p40, %s41, %s42
      %p46 = pneg %p40
      %p47 = scmp.eq.s32.totalorder %s17, 1
      %p48 = por %p46, %p47
      %p49 = scmp.ne.s32.totalorder %s41, %s44
      %p50 = scmp.eq.s32.totalorder %s17, 0
      %p51 = por %p49, %p50
      %p52 = scmp.ne.s32.totalorder %s41, %s44
      %p53 = scmp.eq.s32.totalorder %s22, 1
      %p54 = por %p52, %p53
      %p55 = scmp.ne.s32.totalorder %s44, %s45
      %p56 = scmp.eq.s32.totalorder %s22, 0
      %p57 = por %p55, %p56
      %p58 = scmp.ne.s32.totalorder %s44, %s45
      %p59 = scmp.eq.s32.totalorder %s23, 1
      %p60 = por %p58, %p59
      %p62 = scmp.ne.s32.totalorder %s45, %s61
      %p63 = scmp.eq.s32.totalorder %s23, 0
      %p64 = por %p62, %p63
      %s65 = ssub.s32 %s24, %s36
      %s66 = ssub.s32 %s25, %s32
      %s67 = sor.u32 %s65, %s66
      %p68 = scmp.eq.s32.totalorder %s67, 0
      %s70 = sadd.s32 %s69, 1
      %s71 = scalar_select %p68, %s69, %s70
      %p74 = pneg %p68
      %p75 = scmp.eq.s32.totalorder %s17, 1
      %p76 = por %p74, %p75
      %p77 = scmp.ne.s32.totalorder %s69, %s72
      %p78 = scmp.eq.s32.totalorder %s17, 0
      %p79 = por %p77, %p78
      %p80 = scmp.ne.s32.totalorder %s69, %s72
      %p81 = scmp.eq.s32.totalorder %s22, 1
      %p82 = por %p80, %p81
      %p83 = scmp.ne.s32.totalorder %s72, %s73
      %p84 = scmp.eq.s32.totalorder %s22, 0
      %p85 = por %p83, %p84
      %p86 = scmp.ne.s32.totalorder %s72, %s73
      %p87 = scmp.eq.s32.totalorder %s23, 1
      %p88 = por %p86, %p87
      %p90 = scmp.ne.s32.totalorder %s73, %s89
      %p91 = scmp.eq.s32.totalorder %s23, 0
      %p92 = por %p90, %p91
      %s93 = ssub.s32 %s24, %s36
      %p94 = scmp.eq.s32.totalorder %s93, 0
      %s96 = sadd.s32 %s95, 1
      %s97 = scalar_select %p94, %s95, %s96
      %p100 = pneg %p94
      %p101 = scmp.eq.s32.totalorder %s17, 1
      %p102 = por %p100, %p101
      %p103 = scmp.ne.s32.totalorder %s95, %s98
      %p104 = scmp.eq.s32.totalorder %s17, 0
      %p105 = por %p103, %p104
      %p106 = scmp.ne.s32.totalorder %s95, %s98
      %p107 = scmp.eq.s32.totalorder %s22, 1
      %p108 = por %p106, %p107
      %p109 = scmp.ne.s32.totalorder %s98, %s99
      %p110 = scmp.eq.s32.totalorder %s22, 0
      %p111 = por %p109, %p110
      %p112 = scmp.ne.s32.totalorder %s98, %s99
      %p113 = scmp.eq.s32.totalorder %s23, 1
      %p114 = por %p112, %p113
      %p116 = scmp.ne.s32.totalorder %s99, %s115
      %p117 = scmp.eq.s32.totalorder %s23, 0
      %p118 = por %p116, %p117
      %p119 = scmp.le.s32.totalorder 1, %s17
      %p120 = scmp.lt.s32.totalorder %s17, 3
      %p121 = pnand %p119, %p120
      %p122 = pneg %p121
      // Predicated region
      $region9: #{tpu_custom_call.1} parent=5 // pred_check
        _
      $region10: #{tpu_custom_call.1} parent=5 // pred_check_branch
        %124 = sbr.rel (%p121) target = $region12
      $region11: #{tpu_custom_call.1} parent=5 // pred_region
        %s125 = ssub.s32 %s17, 1
      $region12: #{tpu_custom_call.1} parent=5 // pred_fallthru
        _
      %p126 = scmp.lt.s32.totalorder %s17, 2
      // Predicated region
      $region13: #{tpu_custom_call.1} parent=5 // pred_check
        %p127 = pneg %p126
      $region14: #{tpu_custom_call.1} parent=5 // pred_check_branch
        %129 = sbr.rel (%p127) target = $region16
      $region15: #{tpu_custom_call.1} parent=5 // pred_region
        // Predicated region
        $region17: #{tpu_custom_call.1} parent=15 // pred_check
          %p130 = pneg %p51
        $region18: #{tpu_custom_call.1} parent=15 // pred_check_branch
          %132 = sbr.rel (%p130) target = $region20
        $region19: #{tpu_custom_call.1} parent=15 // pred_region
          %s133 = sand.u32 %s41, 1
          %s134 = scalar_lea.sflag [#allocation3], %s133
          %s135 = sand.u32 %s41, 1
          %s136 = smul.addr %s135, 8
          %s137 = scalar_lea.vmem [#allocation2], %s136
          %139 = vsyncadd %s134, 0
          %s140 = sadd.s32 %s25, %s24
          %s141 = smul.addr %s140, 8
          %s142 = scalar_lea.hbm %s0, %s141
          %s144 = sshll.u32 %s142, 4
          %s145 = int_to_ptr.hbm [resolvable:$true] %s144
          %s146 = sshll.u32 %s137, 4
          %s147 = int_to_ptr.vmem [resolvable:$true] %s146
          %149 = dma.hbm_to_vmem [thread:$0]  %s145, 128, %s147, %s134
        $region20: #{tpu_custom_call.1} parent=15 // pred_fallthru
          _
        // Predicated region
        $region21: #{tpu_custom_call.1} parent=15 // pred_check
          %p150 = pneg %p79
        $region22: #{tpu_custom_call.1} parent=15 // pred_check_branch
          %152 = sbr.rel (%p150) target = $region24
        $region23: #{tpu_custom_call.1} parent=15 // pred_region
          %s153 = sand.u32 %s69, 1
          %s154 = scalar_lea.sflag [#allocation6], %s153
          %s155 = sand.u32 %s69, 1
          %s156 = smul.addr %s155, 8
          %s157 = scalar_lea.vmem [#allocation5], %s156
          %159 = vsyncadd %s154, 0
          %s160 = sadd.s32 %s25, %s24
          %s161 = smul.addr %s160, 8
          %s162 = scalar_lea.hbm %s1, %s161
          %s164 = sshll.u32 %s162, 4
          %s165 = int_to_ptr.hbm [resolvable:$true] %s164
          %s166 = sshll.u32 %s157, 4
          %s167 = int_to_ptr.vmem [resolvable:$true] %s166
          %169 = dma.hbm_to_vmem [thread:$0]  %s165, 128, %s167, %s154
        $region24: #{tpu_custom_call.1} parent=15 // pred_fallthru
          _
      $region16: #{tpu_custom_call.1} parent=5 // pred_fallthru
        _
      %p170 = scmp.le.s32.totalorder 1, %s17
      %p171 = scmp.lt.s32.totalorder %s17, 3
      %p172 = pnand %p170, %p171
      %p173 = pneg %p172
      // Predicated region
      $region25: #{tpu_custom_call.1} parent=5 // pred_check
        _
      $region26: #{tpu_custom_call.1} parent=5 // pred_check_branch
        %175 = sbr.rel (%p172) target = $region28
      $region27: #{tpu_custom_call.1} parent=5 // pred_region
        %s176 = ssub.s32 %s17, 1
        %s177 = sand.u32 %s44, 1
        %s178 = scalar_lea.sflag [#allocation3], %s177
        %s179 = sand.u32 %s44, 1
        %s180 = smul.addr %s179, 8
        %s181 = scalar_lea.vmem [#allocation2], %s180
        // Predicated region
        $region29: #{tpu_custom_call.1} parent=27 // pred_check
          %p182 = pneg %p57
        $region30: #{tpu_custom_call.1} parent=27 // pred_check_branch
          %184 = sbr.rel (%p182) target = $region32
        $region31: #{tpu_custom_call.1} parent=27 // pred_region
          %186 = dma.done %s178, 128
        $region32: #{tpu_custom_call.1} parent=27 // pred_fallthru
          _
        %s187 = sand.u32 %s72, 1
        %s188 = scalar_lea.sflag [#allocation6], %s187
        %s189 = sand.u32 %s72, 1
        %s190 = smul.addr %s189, 8
        %s191 = scalar_lea.vmem [#allocation5], %s190
        // Predicated region
        $region33: #{tpu_custom_call.1} parent=27 // pred_check
          %p192 = pneg %p85
        $region34: #{tpu_custom_call.1} parent=27 // pred_check_branch
          %194 = sbr.rel (%p192) target = $region36
        $region35: #{tpu_custom_call.1} parent=27 // pred_region
          %196 = dma.done %s188, 128
        $region36: #{tpu_custom_call.1} parent=27 // pred_fallthru
          _
        %s197 = sand.u32 %s44, 1
        %s198 = scalar_lea.sflag [#allocation3], %s197
        %s199 = sand.u32 %s44, 1
        %s200 = smul.addr %s199, 8
        %s201 = scalar_lea.vmem [#allocation2], %s200
        %p202 = pneg %p57
        %p203 = pneg %p54
        %s204 = sand.u32 %s72, 1
        %s205 = scalar_lea.sflag [#allocation6], %s204
        %s206 = sand.u32 %s72, 1
        %s207 = smul.addr %s206, 8
        %s208 = scalar_lea.vmem [#allocation5], %s207
        %p209 = pneg %p85
        %p210 = pneg %p82
        %p211 = pneg %p111
        %p212 = pneg %p108
        %s213 = sand.u32 %s98, 1
        %s214 = scalar_lea.sflag [#allocation4], %s213
        %s215 = sand.u32 %s98, 1
        %s216 = smul.addr %s215, 8
        %s217 = scalar_lea.vmem [#allocation7], %s216
        %v218 = vld [vmem:[%s181] sm:$0xff]
        %v219 = vld [vmem:[%s191] sm:$0xff]
        %v220 = vlog2.pop %v218
        %v221 = vmul.f32 %v220, 0.6931472
        %v222 = vmax.f32 %v221, -100.0
        %v223 = vsub.f32 1.0, %v218
        %v224 = vlog2.pop %v223
        %v225 = vmul.f32 %v224, 0.6931472
        %v226 = vmax.f32 %v225, -100.0
        %v227 = vsub.f32 %v222, %v226
        %v228 = vmul.f32 %v219, %v227
        %v229 = vadd.f32 %v228, %v226
        %v230 = vmul.f32 %v229, 1.442695
        %v231 = vpow.pop %v230
        %v232 = vsub.f32 1.0, %v231
        %v233 = vmul.f32 %v232, %v232
        %v234 = vmul.f32 %v233, %v229
        %v235 = vadd.f32 %v234, 0.0
        %p236 = scmp.eq.s32.totalorder %s27, 0
        // Predicated region
        $region37: #{tpu_custom_call.1} parent=27 // pred_check
          %p237 = pneg %p236
        $region38: #{tpu_custom_call.1} parent=27 // pred_check_branch
          %239 = sbr.rel (%p237) target = $region40
        $region39: #{tpu_custom_call.1} parent=27 // pred_region
          %240 = vst [vmem:[%s217] sm:$0xff] %v235
        $region40: #{tpu_custom_call.1} parent=27 // pred_fallthru
          _
        %p241 = scmp.gt.s32.totalorder %s27, 0
        // Predicated region
        $region41: #{tpu_custom_call.1} parent=27 // pred_check
          %p242 = pneg %p241
        $region42: #{tpu_custom_call.1} parent=27 // pred_check_branch
          %244 = sbr.rel (%p242) target = $region44
        $region43: #{tpu_custom_call.1} parent=27 // pred_region
          %v245 = vld [vmem:[%s217] sm:$0xff]
          %v246 = vadd.f32 %v245, %v235
          %247 = vst [vmem:[%s217] sm:$0xff] %v246
        $region44: #{tpu_custom_call.1} parent=27 // pred_fallthru
          _
        %s248 = sand.u32 %s98, 1
        %s249 = scalar_lea.sflag [#allocation4], %s248
        %s250 = sand.u32 %s98, 1
        %s251 = smul.addr %s250, 8
        %s252 = scalar_lea.vmem [#allocation7], %s251
        // Predicated region
        $region45: #{tpu_custom_call.1} parent=27 // pred_check
          %p253 = pneg %p108
        $region46: #{tpu_custom_call.1} parent=27 // pred_check_branch
          %255 = sbr.rel (%p253) target = $region48
        $region47: #{tpu_custom_call.1} parent=27 // pred_region
          %257 = vsyncadd %s249, 0
          %s258 = smul.addr %s26, 8
          %s259 = scalar_lea.hbm %s2, %s258
          %s261 = sshll.u32 %s252, 4
          %s262 = int_to_ptr.vmem [resolvable:$true] %s261
          %s263 = sshll.u32 %s259, 4
          %s264 = int_to_ptr.hbm [resolvable:$true] %s263
          %266 = dma.vmem_to_hbm [thread:$0]  %s262, 128, %s264, %s249
        $region48: #{tpu_custom_call.1} parent=27 // pred_fallthru
          _
      $region28: #{tpu_custom_call.1} parent=5 // pred_fallthru
        _
      %p267 = scmp.le.s32.totalorder 2, %s17
      // Predicated region
      $region49: #{tpu_custom_call.1} parent=5 // pred_check
        %p268 = pneg %p267
      $region50: #{tpu_custom_call.1} parent=5 // pred_check_branch
        %270 = sbr.rel (%p268) target = $region52
      $region51: #{tpu_custom_call.1} parent=5 // pred_region
        %s271 = ssub.s32 %s17, 2
        // Predicated region
        $region53: #{tpu_custom_call.1} parent=51 // pred_check
          %p272 = pneg %p114
        $region54: #{tpu_custom_call.1} parent=51 // pred_check_branch
          %274 = sbr.rel (%p272) target = $region56
        $region55: #{tpu_custom_call.1} parent=51 // pred_region
          %s275 = sand.u32 %s99, 1
          %s276 = scalar_lea.sflag [#allocation4], %s275
          %s277 = sand.u32 %s99, 1
          %s278 = smul.addr %s277, 8
          %s279 = scalar_lea.vmem [#allocation7], %s278
          %281 = dma.done %s276, 128
        $region56: #{tpu_custom_call.1} parent=51 // pred_fallthru
          _
      $region52: #{tpu_custom_call.1} parent=5 // pred_fallthru
        _
    $region6: #{tpu_custom_call.1} parent=1 // loop_footer
      %s21 = sadd.s32 1, %s17
    $region7: #{tpu_custom_call.1} parent=1 // loop_footer_branch
      %16 = sbr.rel target = $region3
    $region8: #{tpu_custom_call.1} parent=1 // loop_exit
      _
    %282 = vsyncpa [#allocation3], 1
    %s283 = scalar_lea.sflag [#allocation3], 1
    %284 = vsyncpa %s283, 1
    %285 = vsyncpa [#allocation6], 1
    %s286 = scalar_lea.sflag [#allocation6], 1
    %287 = vsyncpa %s286, 1
    %288 = vsyncpa [#allocation4], 1
    %s289 = scalar_lea.sflag [#allocation4], 1
    %290 = vsyncpa %s289, 1

</llo_original>
